<compile_context>
chip_gen: v5e
topology: v5e:2x2
jax: 0.10.0
libtpu: 0.0.40
codegen_flags: <defaults>
</compile_context>

<pallas_src>
import functools

import jax
import jax.numpy as jnp
from jax.experimental import pallas as pl
from jax.experimental.pallas import tpu as pltpu


def _dense_film_kernel(x_ref, ws_ref, wsh_ref, bs_ref, bsh_ref,
                       scale_ref, shift_ref, *, mxu_bf16):
    # x_ref: [TB, C]; ws_ref/wsh_ref: [C, C]; bs_ref/bsh_ref: [1, C]
    # scale_ref/shift_ref: [TB, C]
    x = x_ref[...].astype(jnp.float32)  # Mish elementwise math stays f32 (v5e has no bf16 VPU/EUP)

    # Single-exp Mish: tanh(softplus(x)) = (e^2 + 2e) / (e^2 + 2e + 2), e = exp(x).
    # Clamp the exp argument and pass x straight through for x > 20 (mish(x) ~= x there).
    e = jnp.exp(jnp.minimum(x, 20.0))
    u = e * e + 2.0 * e
    mish = jnp.where(x > 20.0, x, x * (u / (u + 2.0)))  # exact divide: EUP slot has slack

    if mxu_bf16:
        # Full-rate MXU operands for large C (v6e/v7x); accumulation stays f32.
        lhs = mish.astype(jnp.bfloat16)
        ws = ws_ref[...].astype(jnp.bfloat16)
        wsh = wsh_ref[...].astype(jnp.bfloat16)
    else:
        lhs = mish
        ws = ws_ref[...].astype(jnp.float32)
        wsh = wsh_ref[...].astype(jnp.float32)

    scale = jnp.dot(lhs, ws, preferred_element_type=jnp.float32)
    shift = jnp.dot(lhs, wsh, preferred_element_type=jnp.float32)
    scale = scale + bs_ref[...].astype(jnp.float32)
    shift = shift + bsh_ref[...].astype(jnp.float32)

    scale_ref[...] = scale.astype(scale_ref.dtype)
    shift_ref[...] = shift.astype(shift_ref.dtype)


def dense_film(position, weight, bias, *, block_b=4096, out_dtype=None):
    """DenseFiLM forward.

    Args:
      position: [B, C] input.
      weight:   [2C, C] nn.Linear(embed_channels, 2*embed_channels) weight (PyTorch layout).
      bias:     [2C] nn.Linear bias.
      block_b:  batch tile upper bound (multiple of 8).
      out_dtype: dtype for scale/shift (defaults to position.dtype; use bf16 for bf16 consumers).

    Returns:
      (scale, shift), each [B, 1, C] — matching `rearrange(out, 'b c -> b 1 c').chunk(2, -1)`.
    """
    B, C = position.shape
    assert weight.shape == (2 * C, C) and bias.shape == (2 * C,)
    out_dtype = position.dtype if out_dtype is None else jnp.dtype(out_dtype)

    # Pre-split weight/bias so each matmul's result lands directly in its output tile
    # (no lane-crossing column slice on the store path). Stored transposed as [C, C]
    # so the kernel does plain (TB, C) x (C, C) MXU matmuls.
    w_scale = weight[:C, :].T       # [C, C]
    w_shift = weight[C:, :].T       # [C, C]
    b_scale = bias[:C].reshape(1, C)
    b_shift = bias[C:].reshape(1, C)

    # Batch tile: biggest that comfortably fits VMEM; keep it a multiple of 8.
    TB = min(B, block_b)
    # v7x has 2 TensorCores: ensure >= 2 grid steps when B admits two >= 8-row tiles.
    # On 1-TC v5e/v6e the extra grid step costs ~0.35 us — negligible.
    if TB == B and B >= 16:
        TB = ((pl.cdiv(B, 2) + 7) // 8) * 8
    grid = (pl.cdiv(B, TB),)

    # Advisory cost hint: two [B,C]x[C,C] matmuls + elementwise Mish, 1 transcendental/elem.
    cost = pl.CostEstimate(
        flops=4 * B * C * C + 8 * B * C,
        transcendentals=B * C,
        bytes_accessed=(position.dtype.itemsize * B * C
                        + 4 * (2 * C * C + 2 * C)
                        + 2 * out_dtype.itemsize * B * C),
    )

    kernel = functools.partial(_dense_film_kernel, mxu_bf16=(C >= 256))

    scale2d, shift2d = pl.pallas_call(
        kernel,
        out_shape=(
            jax.ShapeDtypeStruct((B, C), out_dtype),
            jax.ShapeDtypeStruct((B, C), out_dtype),
        ),
        grid=grid,
        in_specs=[
            pl.BlockSpec((TB, C), lambda i: (i, 0)),   # position: streamed per batch tile
            pl.BlockSpec((C, C), lambda i: (0, 0)),    # w_scale: resident across the grid
            pl.BlockSpec((C, C), lambda i: (0, 0)),    # w_shift: resident across the grid
            pl.BlockSpec((1, C), lambda i: (0, 0)),    # b_scale: resident
            pl.BlockSpec((1, C), lambda i: (0, 0)),    # b_shift: resident
        ],
        out_specs=[
            pl.BlockSpec((TB, C), lambda i: (i, 0)),
            pl.BlockSpec((TB, C), lambda i: (i, 0)),
        ],
        compiler_params=pltpu.CompilerParams(dimension_semantics=("parallel",)),
        cost_estimate=cost,
    )(position, w_scale, w_shift, b_scale, b_shift)

    # 'b c -> b 1 c' + chunk(2, dim=-1): metadata-only reshapes (no HBM traffic).
    return scale2d[:, None, :], shift2d[:, None, :]


def _reference(position, weight, bias):
    x = position.astype(jnp.float32)
    mish = x * jnp.tanh(jax.nn.softplus(x))
    out = mish @ weight.T.astype(jnp.float32) + bias.astype(jnp.float32)
    out = out[:, None, :]
    C = position.shape[1]
    return out[..., :C], out[..., C:]


if __name__ == "__main__":
    B = 8
    embed_channels = 32

    key = jax.random.PRNGKey(0)
    k_pos, k_w, k_b = jax.random.split(key, 3)

    position = jax.random.normal(k_pos, (B, embed_channels), dtype=jnp.float32)

    # nn.Linear(embed_channels, 2*embed_channels): weight [2C, C], bias [2C].
    bound = 1.0 / (embed_channels ** 0.5)
    weight = jax.random.uniform(k_w, (2 * embed_channels, embed_channels),
                                dtype=jnp.float32, minval=-bound, maxval=bound)
    bias = jax.random.uniform(k_b, (2 * embed_channels,),
                              dtype=jnp.float32, minval=-bound, maxval=bound)

    scale, shift = dense_film(position, weight, bias)
    jax.block_until_ready((scale, shift))

    ref_scale, ref_shift = _reference(position, weight, bias)
    assert scale.shape == (B, 1, embed_channels)
    assert shift.shape == (B, 1, embed_channels)
    # Exact-divide Mish + f32 matmul: tight tolerance.
    assert jnp.allclose(scale, ref_scale, atol=1e-5, rtol=1e-5)
    assert jnp.allclose(shift, ref_shift, atol=1e-5, rtol=1e-5)

    print("KERNEL_OK")
</pallas_src>

<mosaic_0001>
module attributes {stable_mosaic.version = 11 : i64} {
  func.func @_dense_film_kernel(%arg0: i32, %arg1: memref<8x32xf32, #tpu.memory_space<vmem>>, %arg2: memref<32x32xf32, #tpu.memory_space<vmem>>, %arg3: memref<32x32xf32, #tpu.memory_space<vmem>>, %arg4: memref<1x32xf32, #tpu.memory_space<vmem>>, %arg5: memref<1x32xf32, #tpu.memory_space<vmem>>, %arg6: memref<8x32xf32, #tpu.memory_space<vmem>>, %arg7: memref<8x32xf32, #tpu.memory_space<vmem>>) attributes {dimension_semantics = [#tpu.dimension_semantics<parallel>], iteration_bounds = array<i64: 1>, scalar_prefetch = 0 : i64, scratch_operands = 0 : i64, tpu.core_type = #tpu.core_type<tc>, window_params = [{transform_indices = @transform_0, window_bounds = array<i64: 8, 32>}, {pipeline_mode = #tpu.pipeline_mode<synchronous>, transform_indices = @transform_1, window_bounds = array<i64: 32, 32>}, {pipeline_mode = #tpu.pipeline_mode<synchronous>, transform_indices = @transform_2, window_bounds = array<i64: 32, 32>}, {pipeline_mode = #tpu.pipeline_mode<synchronous>, transform_indices = @transform_3, window_bounds = array<i64: 1, 32>}, {pipeline_mode = #tpu.pipeline_mode<synchronous>, transform_indices = @transform_4, window_bounds = array<i64: 1, 32>}, {transform_indices = @transform_5, window_bounds = array<i64: 8, 32>}, {transform_indices = @transform_6, window_bounds = array<i64: 8, 32>}]} {
    %c0 = arith.constant 0 : index
    %c0_0 = arith.constant 0 : index
    %0 = vector.load %arg1[%c0, %c0_0] : memref<8x32xf32, #tpu.memory_space<vmem>>, vector<8x32xf32>
    %cst = arith.constant 2.000000e+01 : f32
    %1 = vector.broadcast %cst : f32 to vector<8x32xf32>
    %2 = arith.minimumf %0, %1 : vector<8x32xf32>
    %3 = math.exp %2 : vector<8x32xf32>
    %4 = arith.mulf %3, %3 : vector<8x32xf32>
    %cst_1 = arith.constant 2.000000e+00 : f32
    %5 = vector.broadcast %cst_1 : f32 to vector<8x32xf32>
    %6 = arith.mulf %5, %3 : vector<8x32xf32>
    %7 = arith.addf %4, %6 : vector<8x32xf32>
    %cst_2 = arith.constant 2.000000e+01 : f32
    %8 = vector.broadcast %cst_2 : f32 to vector<8x32xf32>
    %9 = arith.cmpf ogt, %0, %8 : vector<8x32xf32>
    %cst_3 = arith.constant 2.000000e+00 : f32
    %10 = vector.broadcast %cst_3 : f32 to vector<8x32xf32>
    %11 = arith.addf %7, %10 : vector<8x32xf32>
    %12 = arith.divf %7, %11 : vector<8x32xf32>
    %13 = arith.mulf %0, %12 : vector<8x32xf32>
    %14 = arith.select %9, %0, %13 : vector<8x32xi1>, vector<8x32xf32>
    %c0_4 = arith.constant 0 : index
    %c0_5 = arith.constant 0 : index
    %15 = vector.load %arg2[%c0_4, %c0_5] : memref<32x32xf32, #tpu.memory_space<vmem>>, vector<32x32xf32>
    %c0_6 = arith.constant 0 : index
    %c0_7 = arith.constant 0 : index
    %16 = vector.load %arg3[%c0_6, %c0_7] : memref<32x32xf32, #tpu.memory_space<vmem>>, vector<32x32xf32>
    %cst_8 = arith.constant dense<0.000000e+00> : vector<8x32xf32>
    %17 = tpu.matmul %14, %15, %cst_8 {dimension_numbers = #tpu.dot_dimension_numbers<[1], [0], [0], [1], [0, 0, 1, 1], [], []>} : vector<8x32xf32>, vector<32x32xf32>, vector<8x32xf32> -> vector<8x32xf32>
    %cst_9 = arith.constant dense<0.000000e+00> : vector<8x32xf32>
    %18 = tpu.matmul %14, %16, %cst_9 {dimension_numbers = #tpu.dot_dimension_numbers<[1], [0], [0], [1], [0, 0, 1, 1], [], []>} : vector<8x32xf32>, vector<32x32xf32>, vector<8x32xf32> -> vector<8x32xf32>
    %c0_10 = arith.constant 0 : index
    %c0_11 = arith.constant 0 : index
    %19 = vector.load %arg4[%c0_10, %c0_11] : memref<1x32xf32, #tpu.memory_space<vmem>>, vector<1x32xf32>
    %20 = vector.broadcast %19 : vector<1x32xf32> to vector<8x32xf32>
    %21 = arith.addf %17, %20 : vector<8x32xf32>
    %c0_12 = arith.constant 0 : index
    %c0_13 = arith.constant 0 : index
    %22 = vector.load %arg5[%c0_12, %c0_13] : memref<1x32xf32, #tpu.memory_space<vmem>>, vector<1x32xf32>
    %23 = vector.broadcast %22 : vector<1x32xf32> to vector<8x32xf32>
    %24 = arith.addf %18, %23 : vector<8x32xf32>
    %c0_14 = arith.constant 0 : index
    %c0_15 = arith.constant 0 : index
    %25 = vector.load %arg6[%c0_14, %c0_15] : memref<8x32xf32, #tpu.memory_space<vmem>>, vector<8x32xf32>
    tpu.vector_store %arg6[%c0_14, %c0_15], %21 {strides = array<i32>} : memref<8x32xf32, #tpu.memory_space<vmem>>, vector<8x32xf32>,
    %c0_16 = arith.constant 0 : index
    %c0_17 = arith.constant 0 : index
    %26 = vector.load %arg7[%c0_16, %c0_17] : memref<8x32xf32, #tpu.memory_space<vmem>>, vector<8x32xf32>
    tpu.vector_store %arg7[%c0_16, %c0_17], %24 {strides = array<i32>} : memref<8x32xf32, #tpu.memory_space<vmem>>, vector<8x32xf32>,
    return
  }
  func.func @transform_0(%arg0: i32) -> (i32, i32) {
    %c0_i32 = arith.constant 0 : i32
    %c0_i32_0 = arith.constant 0 : i32
    return %arg0, %c0_i32 : i32, i32
  }
  func.func @transform_1(%arg0: i32) -> (i32, i32) {
    %c0_i32 = arith.constant 0 : i32
    %c0_i32_0 = arith.constant 0 : i32
    %c0_i32_1 = arith.constant 0 : i32
    return %c0_i32, %c0_i32_0 : i32, i32
  }
  func.func @transform_2(%arg0: i32) -> (i32, i32) {
    %c0_i32 = arith.constant 0 : i32
    %c0_i32_0 = arith.constant 0 : i32
    %c0_i32_1 = arith.constant 0 : i32
    return %c0_i32, %c0_i32_0 : i32, i32
  }
  func.func @transform_3(%arg0: i32) -> (i32, i32) {
    %c0_i32 = arith.constant 0 : i32
    %c0_i32_0 = arith.constant 0 : i32
    %c0_i32_1 = arith.constant 0 : i32
    return %c0_i32, %c0_i32_0 : i32, i32
  }
  func.func @transform_4(%arg0: i32) -> (i32, i32) {
    %c0_i32 = arith.constant 0 : i32
    %c0_i32_0 = arith.constant 0 : i32
    %c0_i32_1 = arith.constant 0 : i32
    return %c0_i32, %c0_i32_0 : i32, i32
  }
  func.func @transform_5(%arg0: i32) -> (i32, i32) {
    %c0_i32 = arith.constant 0 : i32
    %c0_i32_0 = arith.constant 0 : i32
    return %arg0, %c0_i32 : i32, i32
  }
  func.func @transform_6(%arg0: i32) -> (i32, i32) {
    %c0_i32 = arith.constant 0 : i32
    %c0_i32_0 = arith.constant 0 : i32
    return %arg0, %c0_i32 : i32, i32
  }
}

</mosaic_0001>

<llo_original>
// kernel: tpu_custom_call.1
$region0: #{tpu_custom_call.1}
  #allocation0 [shape = 'u32[]', space=smem, size = 0x4, offset = 0x4, fixed_abs, tag = 'smem constant byte address 0x4 - core index']
  #allocation1 [shape = 'u32[72,128]{1,0:T(1,128)}', space=vmem, size = 0x9000, scoped, tag = 'internal scratch']
  %s0 = inlined_call_operand.hbm [shape: f32[8,32], index: 0, kind: input, shape index: {}]
  %s1 = inlined_call_operand.hbm [shape: f32[32,32], index: 1, kind: input, shape index: {}]
  %s2 = inlined_call_operand.hbm [shape: f32[32,32], index: 2, kind: input, shape index: {}]
  %s3 = inlined_call_operand.vmem [shape: f32[1,32], index: 3, kind: input, shape index: {}]
  %s4 = inlined_call_operand.vmem [shape: f32[1,32], index: 4, kind: input, shape index: {}]
  %s5 = inlined_call_operand.hbm [shape: f32[8,32], index: 5, kind: output, shape index: {0}]
  %s6 = inlined_call_operand.hbm [shape: f32[8,32], index: 6, kind: output, shape index: {1}]
  %7 = xla_tuple %s5, %s6
  %s8 = sld [smem:[#allocation0]]
  $region50: #{tpu_custom_call.1} parent=0
    _
  %s10 = ssub.s32 1, %s8
  %s11 = scalar_select 0, %s10, %s8
  $region1: #{tpu_custom_call.1} parent=0
    #allocation2 [shape = 'u8[4096]{0}', space=vmem, size = 0x1000, scoped, tag = 'input window, operand 0, single buffered']
    #allocation3 [shape = 's32[1]{0}', space=sflag, size = 0x4, scoped, tag = 'scoped memory for tpu_custom_call.1']
    #allocation4 [shape = 's32[1]{0}', space=sflag, size = 0x4, scoped, tag = 'scoped memory for tpu_custom_call.1']
    #allocation5 [shape = 'u8[16384]{0}', space=vmem, size = 0x4000, scoped, tag = 'input window, operand 1, single buffered']
    #allocation6 [shape = 's32[1]{0}', space=sflag, size = 0x4, scoped, tag = 'scoped memory for tpu_custom_call.1']
    #allocation7 [shape = 'u8[16384]{0}', space=vmem, size = 0x4000, scoped, tag = 'input window, operand 2, single buffered']
    #allocation8 [shape = 'u8[4096]{0}', space=vmem, size = 0x1000, scoped, tag = 'output window, operand 0, single buffered']
    #allocation9 [shape = 'u8[4096]{0}', space=vmem, size = 0x1000, scoped, tag = 'output window, operand 1, single buffered']
    #allocation10 [shape = 's32[1]{0}', space=sflag, size = 0x4, scoped, tag = 'scoped memory for tpu_custom_call.1']
    %12 = vsyncpa [#allocation3], 0
    %13 = vsyncpa [#allocation6], 0
    %14 = vsyncpa [#allocation4], 0
    %15 = vsyncpa [#allocation10], 0
    // Predicated region
    $region2: #{tpu_custom_call.1} parent=1 // pred_check
      _
    $region3: #{tpu_custom_call.1} parent=1 // pred_check_branch
      %17 = sbr.rel (0) target = $region5
    $region4: #{tpu_custom_call.1} parent=1 // pred_region
      %19 = vsyncadd [#allocation3], 0
      %s21 = sshll.u32 %s0, 4
      %s22 = int_to_ptr.hbm [resolvable:$true] %s21
      %s23 = sshll.u32 [#allocation2], 4
      %s24 = int_to_ptr.vmem [resolvable:$true] %s23
      %26 = dma.hbm_to_vmem [thread:$0]  %s22, 128, %s24, [#allocation3]
    $region5: #{tpu_custom_call.1} parent=1 // pred_fallthru
      _
    // Predicated region
    $region6: #{tpu_custom_call.1} parent=1 // pred_check
      _
    $region7: #{tpu_custom_call.1} parent=1 // pred_check_branch
      %28 = sbr.rel (0) target = $region9
    $region8: #{tpu_custom_call.1} parent=1 // pred_region
      %30 = vsyncadd [#allocation6], 0
      %s31 = sshll.u32 %s1, 4
      %s32 = int_to_ptr.hbm [resolvable:$true] %s31
      %s33 = sshll.u32 [#allocation5], 4
      %s34 = int_to_ptr.vmem [resolvable:$true] %s33
      %39 = dma.hbm_to_vmem [thread:$0]  %s32, 512, %s34, [#allocation6], 128, 128, 8
    $region9: #{tpu_custom_call.1} parent=1 // pred_fallthru
      _
    // Predicated region
    $region10: #{tpu_custom_call.1} parent=1 // pred_check
      _
    $region11: #{tpu_custom_call.1} parent=1 // pred_check_branch
      %41 = sbr.rel (0) target = $region13
    $region12: #{tpu_custom_call.1} parent=1 // pred_region
      %43 = vsyncadd [#allocation6], 0
      %s44 = sshll.u32 %s2, 4
      %s45 = int_to_ptr.hbm [resolvable:$true] %s44
      %s46 = sshll.u32 [#allocation7], 4
      %s47 = int_to_ptr.vmem [resolvable:$true] %s46
      %52 = dma.hbm_to_vmem [thread:$0]  %s45, 512, %s47, [#allocation6], 128, 128, 8
    $region13: #{tpu_custom_call.1} parent=1 // pred_fallthru
      _
    // Predicated region
    $region14: #{tpu_custom_call.1} parent=1 // pred_check
      _
    $region15: #{tpu_custom_call.1} parent=1 // pred_check_branch
      %54 = sbr.rel (0) target = $region17
    $region16: #{tpu_custom_call.1} parent=1 // pred_region
      _
    $region17: #{tpu_custom_call.1} parent=1 // pred_fallthru
      _
    // Predicated region
    $region18: #{tpu_custom_call.1} parent=1 // pred_check
      _
    $region19: #{tpu_custom_call.1} parent=1 // pred_check_branch
      %56 = sbr.rel (0) target = $region21
    $region20: #{tpu_custom_call.1} parent=1 // pred_region
      _
    $region21: #{tpu_custom_call.1} parent=1 // pred_fallthru
      _
    // Predicated region
    $region22: #{tpu_custom_call.1} parent=1 // pred_check
      _
    $region23: #{tpu_custom_call.1} parent=1 // pred_check_branch
      %58 = sbr.rel (0) target = $region25
    $region24: #{tpu_custom_call.1} parent=1 // pred_region
      %60 = dma.done [#allocation3], 128
    $region25: #{tpu_custom_call.1} parent=1 // pred_fallthru
      _
    // Predicated region
    $region26: #{tpu_custom_call.1} parent=1 // pred_check
      _
    $region27: #{tpu_custom_call.1} parent=1 // pred_check_branch
      %62 = sbr.rel (0) target = $region29
    $region28: #{tpu_custom_call.1} parent=1 // pred_region
      %64 = dma.done [#allocation6], 512
    $region29: #{tpu_custom_call.1} parent=1 // pred_fallthru
      _
    // Predicated region
    $region30: #{tpu_custom_call.1} parent=1 // pred_check
      _
    $region31: #{tpu_custom_call.1} parent=1 // pred_check_branch
      %66 = sbr.rel (0) target = $region33
    $region32: #{tpu_custom_call.1} parent=1 // pred_region
      %68 = dma.done [#allocation6], 512
    $region33: #{tpu_custom_call.1} parent=1 // pred_fallthru
      _
    %v69 = vld [vmem:[#allocation2] sm:$0xff]
    %v70 = vmin.f32 %v69, 20.0
    %v71 = vmul.f32 %v70, 1.442695
    %v72 = vpow.pop %v71
    %v73 = vmul.f32 %v72, %v72
    %v74 = vmul.f32 %v72, 2.0
    %v75 = vadd.f32 %v73, %v74
    %vm76 = vcmp.gt.f32.partialorder %v69, 20.0
    %v77 = vadd.f32 %v75, 2.0
    %v78 = vrcp.pop %v77
    %v79 = vmul.f32 %v77, %v78
    %v80 = vsub.f32 1.0, %v79
    %v81 = vmul.f32 %v78, %v80
    %v82 = vadd.f32 %v78, %v81
    %vm83 = vweird.f32 %v77
    %vm84 = vweird.f32 %v78
    %vm85 = vmor %vm83, %vm84
    %v86 = vsel %vm85, %v78, %v82
    %v87 = vand.u32 2147483647, %v77
    %vm88 = vcmp.eq.f32.partialorder %v87, 8.507059e+37
    %v89 = vand.u32 %v77, 2147483648
    %v90 = vor.u32 1.1754944e-38, %v89
    %v91 = vsel %vm88, %v90, %v86
    %v92 = vmul.f32 %v75, %v91
    %v93 = vmul.f32 %v69, %v92
    %v94 = vsel %vm76, %v69, %v93
    %v95 = vld [vmem:[#allocation5] sm:$0xff]
    %v96 = vld [vmem:[#allocation5 + $0x8] sm:$0xff]
    %v97 = vld [vmem:[#allocation5 + $0x10] sm:$0xff]
    %v98 = vld [vmem:[#allocation5 + $0x18] sm:$0xff]
    %v99 = vld [vmem:[#allocation7] sm:$0xff]
    %v100 = vld [vmem:[#allocation7 + $0x8] sm:$0xff]
    %v101 = vld [vmem:[#allocation7 + $0x10] sm:$0xff]
    %v102 = vld [vmem:[#allocation7 + $0x18] sm:$0xff]
    %v103 = vld [vmem:[%s3] sm:$0x1]
    %v105 = vperm.slane %v103, 0
    %vm107 = vcmask 261120
    %v109 = vsel %vm107, %v94, 0
    %111 = vmatpush.msra.mxu0 0.0
    %112 = vmatpush.msra.mxu0 0.0
    %113 = vmatpush.msra.mxu0 0.0
    %114 = vmatpush.msra.mxu0 0.0
    %115 = vmatpush.msra.mxu0 0.0
    %116 = vmatpush.msra.mxu0 0.0
    %117 = vmatpush.msra.mxu0 0.0
    %118 = vmatpush.msra.mxu0 0.0
    %119 = vmatpush.msra.mxu0 0.0
    %120 = vmatpush.msra.mxu0 0.0
    %121 = vmatpush.msra.mxu0 0.0
    %122 = vmatpush.msra.mxu0 0.0
    %123 = vmatpush.msra.mxu0 %v98
    %124 = vmatpush.msra.mxu0 %v97
    %125 = vmatpush.msra.mxu0 %v96
    %126 = vmatpush.msra.mxu0 %v95
    %127 = vmatmul.f32.gmra.mxu0 %v109
    %v128 = vpop.f32.mrf.mxu0
    %v129 = vadd.f32 %v105, %v128
    %130 = vdwg.mxu0
    %v131 = vld [vmem:[%s4] sm:$0x1]
    %v133 = vperm.slane %v131, 0
    %135 = vmatpush.msra.mxu0 0.0
    %136 = vmatpush.msra.mxu0 0.0
    %137 = vmatpush.msra.mxu0 0.0
    %138 = vmatpush.msra.mxu0 0.0
    %139 = vmatpush.msra.mxu0 0.0
    %140 = vmatpush.msra.mxu0 0.0
    %141 = vmatpush.msra.mxu0 0.0
    %142 = vmatpush.msra.mxu0 0.0
    %143 = vmatpush.msra.mxu0 0.0
    %144 = vmatpush.msra.mxu0 0.0
    %145 = vmatpush.msra.mxu0 0.0
    %146 = vmatpush.msra.mxu0 0.0
    %147 = vmatpush.msra.mxu0 %v102
    %148 = vmatpush.msra.mxu0 %v101
    %149 = vmatpush.msra.mxu0 %v100
    %150 = vmatpush.msra.mxu0 %v99
    %151 = vmatmul.f32.gmra.mxu0 %v109
    %v152 = vpop.f32.mrf.mxu0
    %v153 = vadd.f32 %v133, %v152
    %154 = vdwg.mxu0
    %155 = vst.msk [vmem:[#allocation8] sm:$0xff] %vm107, %v129
    %156 = vst.msk [vmem:[#allocation9] sm:$0xff] %vm107, %v153
    // Predicated region
    $region34: #{tpu_custom_call.1} parent=1 // pred_check
      _
    $region35: #{tpu_custom_call.1} parent=1 // pred_check_branch
      %158 = sbr.rel (0) target = $region37
    $region36: #{tpu_custom_call.1} parent=1 // pred_region
      %160 = vsyncadd [#allocation4], 0
      %s162 = sshll.u32 [#allocation8], 4
      %s163 = int_to_ptr.vmem [resolvable:$true] %s162
      %s164 = sshll.u32 %s5, 4
      %s165 = int_to_ptr.hbm [resolvable:$true] %s164
      %167 = dma.vmem_to_hbm [thread:$0]  %s163, 128, %s165, [#allocation4]
    $region37: #{tpu_custom_call.1} parent=1 // pred_fallthru
      _
    // Predicated region
    $region38: #{tpu_custom_call.1} parent=1 // pred_check
      _
    $region39: #{tpu_custom_call.1} parent=1 // pred_check_branch
      %169 = sbr.rel (0) target = $region41
    $region40: #{tpu_custom_call.1} parent=1 // pred_region
      %171 = vsyncadd [#allocation10], 0
      %s173 = sshll.u32 [#allocation9], 4
      %s174 = int_to_ptr.vmem [resolvable:$true] %s173
      %s175 = sshll.u32 %s6, 4
      %s176 = int_to_ptr.hbm [resolvable:$true] %s175
      %178 = dma.vmem_to_hbm [thread:$0]  %s174, 128, %s176, [#allocation10]
    $region41: #{tpu_custom_call.1} parent=1 // pred_fallthru
      _
    // Predicated region
    $region42: #{tpu_custom_call.1} parent=1 // pred_check
      _
    $region43: #{tpu_custom_call.1} parent=1 // pred_check_branch
      %180 = sbr.rel (0) target = $region45
    $region44: #{tpu_custom_call.1} parent=1 // pred_region
      %182 = dma.done [#allocation4], 128
    $region45: #{tpu_custom_call.1} parent=1 // pred_fallthru
      _
    // Predicated region
    $region46: #{tpu_custom_call.1} parent=1 // pred_check
      _
    $region47: #{tpu_custom_call.1} parent=1 // pred_check_branch
      %184 = sbr.rel (0) target = $region49
    $region48: #{tpu_custom_call.1} parent=1 // pred_region
      %186 = dma.done [#allocation10], 128
    $region49: #{tpu_custom_call.1} parent=1 // pred_fallthru
      _
    %187 = vsyncpa [#allocation3], 1
    %188 = vsyncpa [#allocation6], 1
    %189 = vsyncpa [#allocation4], 1
    %190 = vsyncpa [#allocation10], 1

</llo_original>
